<compile_context>
chip_gen: v6e
topology: v6e:2x2x1
jax: 0.10.0
libtpu: 0.0.40
codegen_flags: <defaults>
</compile_context>

<pallas_src>
import functools

import numpy as np

import jax
import jax.numpy as jnp
from jax import lax
from jax.experimental import pallas as pl
from jax.experimental.pallas import tpu as pltpu

_BN_EPS = 1e-5


def _taps(H, W):
    """Canonical order of the 8 off-centre depthwise taps: (dh, dw, lane_delta, tap_k)."""
    out = []
    for dh in (-1, 0, 1):
        for dw in (-1, 0, 1):
            if dh == 0 and dw == 0:
                continue
            out.append((dh, dw, dh * W + dw, (dh + 1) * 3 + (dw + 1)))
    return out


def _build_tap_masks(H, W):
    """(8, H*W) f32 validity masks for the 8 off-centre taps (host precomputed)."""
    HW = H * W
    hh, ww = np.divmod(np.arange(HW), W)
    masks = np.zeros((8, HW), np.float32)
    for t, (dh, dw, _, _) in enumerate(_taps(H, W)):
        ok = (hh + dh >= 0) & (hh + dh < H) & (ww + dw >= 0) & (ww + dw < W)
        masks[t] = ok.astype(np.float32)
    return jnp.asarray(masks)


def _lane_roll(t, shift, hw):
    """jnp.roll-compatible lane rotation of a (C2, HW) slab."""
    if shift == 0:
        return t
    if hw % 128 == 0:
        # Lane dim is vreg-aligned -> Mosaic-native rotate (single XLU vrot / vreg).
        return pltpu.roll(t, shift, axis=1)
    # Non-vreg-aligned lane count: slice+concat lowering.
    return jnp.roll(t, shift, axis=1)


def _inverted_residual_kernel(H, W, B, mm_dtype,
                              x_ref, w1_ref, w3_ref, cp_ref, m_ref, o_ref):
    """Fused stride-1 InvertedResidual for B images per grid step.

    x_ref : (B, 2, C2, HW)  [:, 0] = identity half (x1), [:, 1] = branch2 input (x2)
    w1_ref: (C2, C2)        1x1 conv #1 weights, BN1 scale folded (dtype = mm_dtype)
    w3_ref: (C2, C2)        1x1 conv #2 weights, BN3 scale folded (dtype = mm_dtype)
    cp_ref: (C2, 16)        per-channel params: [:,0:9]=dw taps * s2, [:,9]=b1, [:,10]=b3'
    m_ref : (8, HW)         per-lane validity masks for the 8 off-centre dw taps
    o_ref : (B, C2, 2*HW)   channel-shuffled output: row k = [x1[k] | branch2_out[k]]
    """
    HW = H * W

    cp = cp_ref[...]
    wd = cp[:, 0:9]                                    # depthwise taps (BN2 scale folded)
    b1 = cp[:, 9:10]                                   # BN1 bias
    b3 = cp[:, 10:11]                                  # BN3 bias with BN2 bias folded in

    w1 = w1_ref[...]                                   # resident across the b loop
    w3 = w3_ref[...]
    masks = m_ref[...]                                 # (8, HW)
    tap_dk = [(d, k) for (_, _, d, k) in _taps(H, W)]

    for b in range(B):                                 # static unroll over this step's images
        x1 = x_ref[b, 0]                               # (C2, HW) identity branch
        x2 = x_ref[b, 1]                               # (C2, HW) branch2 input

        # ---- pointwise conv #1 (MXU, mm_dtype-in / f32-acc) + folded BN1 + ReLU ----
        t = jnp.dot(w1, x2.astype(mm_dtype), preferred_element_type=jnp.float32)
        t = jnp.maximum(t + b1, 0.0)

        # ---- 3x3 depthwise conv (stride 1, pad 1) via in-register lane rotations.
        # Host-precomputed boundary masks; two partial accumulators for VALU ILP.
        acc_even = t * wd[:, 4:5]                      # centre tap: no shift, no mask
        acc_odd = None
        for i, (d, k) in enumerate(tap_dk):
            shifted = _lane_roll(t, (-d) % HW, HW)     # shifted[:, p] == t[:, (p + d) % HW]
            term = shifted * masks[i:i + 1, :] * wd[:, k:k + 1]
            if i % 2 == 0:
                acc_even = acc_even + term
            else:
                acc_odd = term if acc_odd is None else acc_odd + term
        acc = acc_even + acc_odd

        # ---- pointwise conv #2 (MXU) + folded BN2-bias/BN3 + ReLU ----
        y = jnp.dot(w3, acc.astype(mm_dtype), preferred_element_type=jnp.float32)
        y = jnp.maximum(y + b3, 0.0)

        # ---- fused concat + channel_shuffle(2): out channel 2k = x1[k], 2k+1 = y[k].
        # Lane-dense (C2, 2*HW) slab; the reshape back to NCHW outside is a free view.
        o_ref[b, :, 0:HW] = x1
        o_ref[b, :, HW:2 * HW] = y.astype(o_ref.dtype)


def _fold_bn(gamma, beta, mean, var):
    s = gamma / jnp.sqrt(var + _BN_EPS)
    return s, beta - mean * s


def inverted_residual_stride1(x, params, *, matmul_dtype=jnp.float32,
                              images_per_step=None):
    """x: (N, C, H, W) float32 NCHW.  Equivalent to InvertedResidual(C, C, stride=1).

    matmul_dtype: operand dtype of the two 1x1-conv MXU matmuls (accumulation is
      always f32).  jnp.bfloat16 runs at native MXU rate on all TPU gens; the
      default f32 matches the PyTorch module's numerics.
    """
    N, C, H, W = x.shape
    C2 = C // 2
    HW = H * W

    s1, b1 = _fold_bn(params["bn1_gamma"], params["bn1_beta"],
                      params["bn1_mean"], params["bn1_var"])
    s2, b2 = _fold_bn(params["bn2_gamma"], params["bn2_beta"],
                      params["bn2_mean"], params["bn2_var"])
    s3, b3 = _fold_bn(params["bn3_gamma"], params["bn3_beta"],
                      params["bn3_mean"], params["bn3_var"])

    # Fold BN scales into the conv weights (in f32), fold BN2's bias through conv #2,
    # then cast the MXU weights to the requested matmul dtype on the host.
    w1_f32 = params["w1"] * s1[:, None]
    w3_f32 = params["w3"] * s3[:, None]
    wd_f32 = params["wd"].reshape(C2, 9) * s2[:, None]
    b3f = b3 + w3_f32 @ b2

    w1f = w1_f32.astype(matmul_dtype)
    w3f = w3_f32.astype(matmul_dtype)

    # One packed per-channel parameter slab: [dw taps (9) | b1 | b3' | pad]  (f32).
    chan_params = jnp.zeros((C2, 16), jnp.float32)
    chan_params = chan_params.at[:, 0:9].set(wd_f32.astype(jnp.float32))
    chan_params = chan_params.at[:, 9].set(b1.astype(jnp.float32))
    chan_params = chan_params.at[:, 10].set(b3f.astype(jnp.float32))

    tap_masks = _build_tap_masks(H, W)                 # (8, HW) f32

    # --- images per grid step --------------------------------------------------
    # Batch images so each DMA is reasonably large and the ~0.35us per-step
    # overhead is amortized, but keep >= 2 grid steps so the next step's DMA
    # overlaps compute (and both v7x TensorCores get work), and keep per-step
    # blocks tiny vs. v7x's 64 MiB VMEM.
    if images_per_step is None:
        per_image_bytes = 2 * C2 * HW * 4
        B = max(1, min(N, (1 << 20) // max(per_image_bytes, 1)))
        while B > 1 and (N + B - 1) // B < 2:
            B -= 1
        while B > 1 and N % B != 0:
            B -= 1
    else:
        B = images_per_step
    assert N % B == 0, (N, B)
    grid = (N // B,)

    x_split = x.reshape(N, 2, C2, HW)                  # free view: [:,0]=x1, [:,1]=x2

    # Advisory cost model: this kernel is HBM-bandwidth bound (AI ~ C2/4 flop/byte).
    flops = N * (4 * C2 * C2 * HW + 20 * C2 * HW)
    bytes_accessed = 4 * (2 * N * 2 * C2 * HW + 2 * C2 * C2 + 16 * C2 + 8 * HW)
    cost = pl.CostEstimate(flops=flops, transcendentals=0,
                           bytes_accessed=bytes_accessed)

    block_bytes = 4 * B * C2 * HW * 4                  # in (2*C2*HW) + out (2*C2*HW) per image
    vmem_limit = int(min(64 * 2 ** 20, max(16 * 2 ** 20, 8 * block_bytes)))

    kernel = functools.partial(_inverted_residual_kernel, H, W, B, matmul_dtype)
    out = pl.pallas_call(
        kernel,
        out_shape=jax.ShapeDtypeStruct((N, C2, 2 * HW), jnp.float32),
        grid_spec=pltpu.PrefetchScalarGridSpec(
            num_scalar_prefetch=0,
            grid=grid,
            in_specs=[
                pl.BlockSpec((B, 2, C2, HW), lambda g: (g, 0, 0, 0)),  # x (B images)
                pl.BlockSpec((C2, C2), lambda g: (0, 0)),              # w1 (BN folded)
                pl.BlockSpec((C2, C2), lambda g: (0, 0)),              # w3 (BN folded)
                pl.BlockSpec((C2, 16), lambda g: (0, 0)),              # per-channel params
                pl.BlockSpec((8, HW), lambda g: (0, 0)),               # depthwise masks
            ],
            out_specs=pl.BlockSpec((B, C2, 2 * HW), lambda g: (g, 0, 0)),
        ),
        compiler_params=pltpu.CompilerParams(
            dimension_semantics=("parallel",),
            vmem_limit_bytes=vmem_limit),
        cost_estimate=cost,
    )(x_split, w1f, w3f, chan_params, tap_masks)

    # (N, C2, 2*HW) already holds the channel-shuffled order -> free reshape to NCHW.
    return out.reshape(N, C, H, W)


def make_params(key, inp, oup):
    bf = oup // 2  # branch_features; stride==1 requires inp == 2*bf
    assert inp == bf * 2
    ks = jax.random.split(key, 15)

    def u(k, shape, lo, hi):
        return jax.random.uniform(k, shape, jnp.float32, lo, hi)

    return dict(
        w1=u(ks[0], (bf, bf), -0.5, 0.5),        # 1x1 conv #1, (out, in)
        wd=u(ks[1], (bf, 3, 3), -0.5, 0.5),      # depthwise 3x3, (C, kh, kw)
        w3=u(ks[2], (bf, bf), -0.5, 0.5),        # 1x1 conv #2, (out, in)
        bn1_gamma=u(ks[3], (bf,), 0.8, 1.2), bn1_beta=u(ks[4], (bf,), -0.2, 0.2),
        bn1_mean=u(ks[5], (bf,), -0.2, 0.2), bn1_var=u(ks[6], (bf,), 0.5, 1.5),
        bn2_gamma=u(ks[7], (bf,), 0.8, 1.2), bn2_beta=u(ks[8], (bf,), -0.2, 0.2),
        bn2_mean=u(ks[9], (bf,), -0.2, 0.2), bn2_var=u(ks[10], (bf,), 0.5, 1.5),
        bn3_gamma=u(ks[11], (bf,), 0.8, 1.2), bn3_beta=u(ks[12], (bf,), -0.2, 0.2),
        bn3_mean=u(ks[13], (bf,), -0.2, 0.2), bn3_var=u(ks[14], (bf,), 0.5, 1.5),
    )


def _reference(x, p):
    """Pure-JAX (XLA conv) reference mirroring the PyTorch forward (eval-mode BN)."""
    N, C, H, W = x.shape
    C2 = C // 2
    x1, x2 = x[:, :C2], x[:, C2:]

    def bn(y, g, b, m, v):
        g, b, m, v = (a[None, :, None, None] for a in (g, b, m, v))
        return (y - m) / jnp.sqrt(v + _BN_EPS) * g + b

    dn = ("NCHW", "OIHW", "NCHW")
    y = lax.conv_general_dilated(x2, p["w1"][:, :, None, None], (1, 1), "VALID",
                                 dimension_numbers=dn)
    y = jax.nn.relu(bn(y, p["bn1_gamma"], p["bn1_beta"], p["bn1_mean"], p["bn1_var"]))
    y = lax.conv_general_dilated(y, p["wd"][:, None, :, :], (1, 1),
                                 ((1, 1), (1, 1)), dimension_numbers=dn,
                                 feature_group_count=C2)
    y = bn(y, p["bn2_gamma"], p["bn2_beta"], p["bn2_mean"], p["bn2_var"])
    y = lax.conv_general_dilated(y, p["w3"][:, :, None, None], (1, 1), "VALID",
                                 dimension_numbers=dn)
    y = jax.nn.relu(bn(y, p["bn3_gamma"], p["bn3_beta"], p["bn3_mean"], p["bn3_var"]))
    out = jnp.concatenate([x1, y], axis=1)
    out = out.reshape(N, 2, C2, H, W).transpose(0, 2, 1, 3, 4).reshape(N, C, H, W)
    return out


if __name__ == "__main__":
    key = jax.random.PRNGKey(0)
    k1x, k1p, k2x, k2p = jax.random.split(key, 4)

    # --- test 1: canonical small shape, exact f32 path, tight tolerance --------
    N, C, H, W = 2, 4, 16, 16          # inp = oup = 4 -> branch_features = 2, stride = 1
    x = jax.random.normal(k1x, (N, C, H, W), jnp.float32)
    params = make_params(k1p, C, C)

    out = jax.block_until_ready(inverted_residual_stride1(x, params))
    ref = _reference(x, params)
    assert out.shape == (N, C, H, W) and out.dtype == jnp.float32
    err = float(jnp.max(jnp.abs(out - ref)))
    assert jnp.allclose(out, ref, atol=1e-3, rtol=1e-3), err

    # --- test 1b: bf16-MXU fast path (f32 accumulation), looser tolerance ------
    out_bf16 = jax.block_until_ready(
        inverted_residual_stride1(x, params, matmul_dtype=jnp.bfloat16))
    err_bf16 = float(jnp.max(jnp.abs(out_bf16 - ref)))
    assert jnp.allclose(out_bf16, ref, atol=5e-2, rtol=5e-2), err_bf16

    # --- test 2: realistic channel count + lane-misaligned HW (14*14=196),
    #             exercises the B>1 image-batching path ------------------------
    N2, C2t, H2, W2 = 4, 116, 14, 14
    x_b = jax.random.normal(k2x, (N2, C2t, H2, W2), jnp.float32)
    params_b = make_params(k2p, C2t, C2t)

    out_b = jax.block_until_ready(inverted_residual_stride1(x_b, params_b))
    ref_b = _reference(x_b, params_b)
    assert out_b.shape == (N2, C2t, H2, W2)
    err_b = float(jnp.max(jnp.abs(out_b - ref_b)))
    assert jnp.allclose(out_b, ref_b, atol=1e-3, rtol=1e-3), err_b

    print("KERNEL_OK")
</pallas_src>

<mosaic_0001>
module attributes {stable_mosaic.version = 11 : i64} {
  func.func @_inverted_residual_kernel(%arg0: i32, %arg1: memref<1x2x2x256xf32, #tpu.memory_space<vmem>>, %arg2: memref<2x2xf32, #tpu.memory_space<vmem>>, %arg3: memref<2x2xf32, #tpu.memory_space<vmem>>, %arg4: memref<2x16xf32, #tpu.memory_space<vmem>>, %arg5: memref<8x256xf32, #tpu.memory_space<vmem>>, %arg6: memref<1x2x512xf32, #tpu.memory_space<vmem>>) attributes {dimension_semantics = [#tpu.dimension_semantics<parallel>], iteration_bounds = array<i64: 2>, scalar_prefetch = 0 : i64, scratch_operands = 0 : i64, tpu.core_type = #tpu.core_type<tc>, window_params = [{transform_indices = @transform_0, window_bounds = array<i64: 1, 2, 2, 256>}, {pipeline_mode = #tpu.pipeline_mode<synchronous>, transform_indices = @transform_1, window_bounds = array<i64: 2, 2>}, {pipeline_mode = #tpu.pipeline_mode<synchronous>, transform_indices = @transform_2, window_bounds = array<i64: 2, 2>}, {pipeline_mode = #tpu.pipeline_mode<synchronous>, transform_indices = @transform_3, window_bounds = array<i64: 2, 16>}, {pipeline_mode = #tpu.pipeline_mode<synchronous>, transform_indices = @transform_4, window_bounds = array<i64: 8, 256>}, {transform_indices = @transform_5, window_bounds = array<i64: 1, 2, 512>}]} {
    %c0 = arith.constant 0 : index
    %c0_0 = arith.constant 0 : index
    %0 = vector.load %arg4[%c0, %c0_0] : memref<2x16xf32, #tpu.memory_space<vmem>>, vector<2x16xf32>
    %1 = vector.extract_strided_slice %0 {offsets = [0, 0], sizes = [2, 9], strides = [1, 1]} : vector<2x16xf32> to vector<2x9xf32>
    %2 = vector.extract_strided_slice %0 {offsets = [0, 9], sizes = [2, 1], strides = [1, 1]} : vector<2x16xf32> to vector<2x1xf32>
    %3 = vector.extract_strided_slice %0 {offsets = [0, 10], sizes = [2, 1], strides = [1, 1]} : vector<2x16xf32> to vector<2x1xf32>
    %c0_1 = arith.constant 0 : index
    %c0_2 = arith.constant 0 : index
    %4 = vector.load %arg2[%c0_1, %c0_2] : memref<2x2xf32, #tpu.memory_space<vmem>>, vector<2x2xf32>
    %c0_3 = arith.constant 0 : index
    %c0_4 = arith.constant 0 : index
    %5 = vector.load %arg3[%c0_3, %c0_4] : memref<2x2xf32, #tpu.memory_space<vmem>>, vector<2x2xf32>
    %c0_5 = arith.constant 0 : index
    %c0_6 = arith.constant 0 : index
    %6 = vector.load %arg5[%c0_5, %c0_6] : memref<8x256xf32, #tpu.memory_space<vmem>>, vector<8x256xf32>
    %c0_7 = arith.constant 0 : index
    %c0_8 = arith.constant 0 : index
    %c0_9 = arith.constant 0 : index
    %c0_10 = arith.constant 0 : index
    %7 = vector.load %arg1[%c0_7, %c0_8, %c0_9, %c0_10] : memref<1x2x2x256xf32, #tpu.memory_space<vmem>>, vector<1x1x2x256xf32>
    %8 = vector.shape_cast %7 : vector<1x1x2x256xf32> to vector<2x256xf32>
    %c0_11 = arith.constant 0 : index
    %c1 = arith.constant 1 : index
    %c0_12 = arith.constant 0 : index
    %c0_13 = arith.constant 0 : index
    %9 = vector.load %arg1[%c0_11, %c1, %c0_12, %c0_13] : memref<1x2x2x256xf32, #tpu.memory_space<vmem>>, vector<1x1x2x256xf32>
    %10 = vector.shape_cast %9 : vector<1x1x2x256xf32> to vector<2x256xf32>
    %cst = arith.constant dense<0.000000e+00> : vector<2x256xf32>
    %11 = tpu.matmul %4, %10, %cst {dimension_numbers = #tpu.dot_dimension_numbers<[1], [0], [0], [1], [0, 0, 1, 1], [], []>} : vector<2x2xf32>, vector<2x256xf32>, vector<2x256xf32> -> vector<2x256xf32>
    %12 = vector.broadcast %2 : vector<2x1xf32> to vector<2x256xf32>
    %13 = arith.addf %11, %12 : vector<2x256xf32>
    %cst_14 = arith.constant 0.000000e+00 : f32
    %14 = vector.broadcast %cst_14 : f32 to vector<2x256xf32>
    %15 = arith.maximumf %13, %14 : vector<2x256xf32>
    %16 = vector.extract_strided_slice %1 {offsets = [0, 4], sizes = [2, 1], strides = [1, 1]} : vector<2x9xf32> to vector<2x1xf32>
    %17 = vector.broadcast %16 : vector<2x1xf32> to vector<2x256xf32>
    %18 = arith.mulf %15, %17 : vector<2x256xf32>
    %c17_i32 = arith.constant 17 : i32
    %19 = tpu.dynamic_rotate %15 by %c17_i32 dim 1 : vector<2x256xf32>, i32 -> vector<2x256xf32>
    %20 = vector.extract_strided_slice %6 {offsets = [0, 0], sizes = [1, 256], strides = [1, 1]} : vector<8x256xf32> to vector<1x256xf32>
    %21 = vector.broadcast %20 : vector<1x256xf32> to vector<2x256xf32>
    %22 = arith.mulf %19, %21 : vector<2x256xf32>
    %23 = vector.extract_strided_slice %1 {offsets = [0, 0], sizes = [2, 1], strides = [1, 1]} : vector<2x9xf32> to vector<2x1xf32>
    %24 = vector.broadcast %23 : vector<2x1xf32> to vector<2x256xf32>
    %25 = arith.mulf %22, %24 : vector<2x256xf32>
    %26 = arith.addf %18, %25 : vector<2x256xf32>
    %c16_i32 = arith.constant 16 : i32
    %27 = tpu.dynamic_rotate %15 by %c16_i32 dim 1 : vector<2x256xf32>, i32 -> vector<2x256xf32>
    %28 = vector.extract_strided_slice %6 {offsets = [1, 0], sizes = [1, 256], strides = [1, 1]} : vector<8x256xf32> to vector<1x256xf32>
    %29 = vector.broadcast %28 : vector<1x256xf32> to vector<2x256xf32>
    %30 = arith.mulf %27, %29 : vector<2x256xf32>
    %31 = vector.extract_strided_slice %1 {offsets = [0, 1], sizes = [2, 1], strides = [1, 1]} : vector<2x9xf32> to vector<2x1xf32>
    %32 = vector.broadcast %31 : vector<2x1xf32> to vector<2x256xf32>
    %33 = arith.mulf %30, %32 : vector<2x256xf32>
    %c15_i32 = arith.constant 15 : i32
    %34 = tpu.dynamic_rotate %15 by %c15_i32 dim 1 : vector<2x256xf32>, i32 -> vector<2x256xf32>
    %35 = vector.extract_strided_slice %6 {offsets = [2, 0], sizes = [1, 256], strides = [1, 1]} : vector<8x256xf32> to vector<1x256xf32>
    %36 = vector.broadcast %35 : vector<1x256xf32> to vector<2x256xf32>
    %37 = arith.mulf %34, %36 : vector<2x256xf32>
    %38 = vector.extract_strided_slice %1 {offsets = [0, 2], sizes = [2, 1], strides = [1, 1]} : vector<2x9xf32> to vector<2x1xf32>
    %39 = vector.broadcast %38 : vector<2x1xf32> to vector<2x256xf32>
    %40 = arith.mulf %37, %39 : vector<2x256xf32>
    %41 = arith.addf %26, %40 : vector<2x256xf32>
    %c1_i32 = arith.constant 1 : i32
    %42 = tpu.dynamic_rotate %15 by %c1_i32 dim 1 : vector<2x256xf32>, i32 -> vector<2x256xf32>
    %43 = vector.extract_strided_slice %6 {offsets = [3, 0], sizes = [1, 256], strides = [1, 1]} : vector<8x256xf32> to vector<1x256xf32>
    %44 = vector.broadcast %43 : vector<1x256xf32> to vector<2x256xf32>
    %45 = arith.mulf %42, %44 : vector<2x256xf32>
    %46 = vector.extract_strided_slice %1 {offsets = [0, 3], sizes = [2, 1], strides = [1, 1]} : vector<2x9xf32> to vector<2x1xf32>
    %47 = vector.broadcast %46 : vector<2x1xf32> to vector<2x256xf32>
    %48 = arith.mulf %45, %47 : vector<2x256xf32>
    %49 = arith.addf %33, %48 : vector<2x256xf32>
    %c255_i32 = arith.constant 255 : i32
    %50 = tpu.dynamic_rotate %15 by %c255_i32 dim 1 : vector<2x256xf32>, i32 -> vector<2x256xf32>
    %51 = vector.extract_strided_slice %6 {offsets = [4, 0], sizes = [1, 256], strides = [1, 1]} : vector<8x256xf32> to vector<1x256xf32>
    %52 = vector.broadcast %51 : vector<1x256xf32> to vector<2x256xf32>
    %53 = arith.mulf %50, %52 : vector<2x256xf32>
    %54 = vector.extract_strided_slice %1 {offsets = [0, 5], sizes = [2, 1], strides = [1, 1]} : vector<2x9xf32> to vector<2x1xf32>
    %55 = vector.broadcast %54 : vector<2x1xf32> to vector<2x256xf32>
    %56 = arith.mulf %53, %55 : vector<2x256xf32>
    %57 = arith.addf %41, %56 : vector<2x256xf32>
    %c241_i32 = arith.constant 241 : i32
    %58 = tpu.dynamic_rotate %15 by %c241_i32 dim 1 : vector<2x256xf32>, i32 -> vector<2x256xf32>
    %59 = vector.extract_strided_slice %6 {offsets = [5, 0], sizes = [1, 256], strides = [1, 1]} : vector<8x256xf32> to vector<1x256xf32>
    %60 = vector.broadcast %59 : vector<1x256xf32> to vector<2x256xf32>
    %61 = arith.mulf %58, %60 : vector<2x256xf32>
    %62 = vector.extract_strided_slice %1 {offsets = [0, 6], sizes = [2, 1], strides = [1, 1]} : vector<2x9xf32> to vector<2x1xf32>
    %63 = vector.broadcast %62 : vector<2x1xf32> to vector<2x256xf32>
    %64 = arith.mulf %61, %63 : vector<2x256xf32>
    %65 = arith.addf %49, %64 : vector<2x256xf32>
    %c240_i32 = arith.constant 240 : i32
    %66 = tpu.dynamic_rotate %15 by %c240_i32 dim 1 : vector<2x256xf32>, i32 -> vector<2x256xf32>
    %67 = vector.extract_strided_slice %6 {offsets = [6, 0], sizes = [1, 256], strides = [1, 1]} : vector<8x256xf32> to vector<1x256xf32>
    %68 = vector.broadcast %67 : vector<1x256xf32> to vector<2x256xf32>
    %69 = arith.mulf %66, %68 : vector<2x256xf32>
    %70 = vector.extract_strided_slice %1 {offsets = [0, 7], sizes = [2, 1], strides = [1, 1]} : vector<2x9xf32> to vector<2x1xf32>
    %71 = vector.broadcast %70 : vector<2x1xf32> to vector<2x256xf32>
    %72 = arith.mulf %69, %71 : vector<2x256xf32>
    %73 = arith.addf %57, %72 : vector<2x256xf32>
    %c239_i32 = arith.constant 239 : i32
    %74 = tpu.dynamic_rotate %15 by %c239_i32 dim 1 : vector<2x256xf32>, i32 -> vector<2x256xf32>
    %75 = vector.extract_strided_slice %6 {offsets = [7, 0], sizes = [1, 256], strides = [1, 1]} : vector<8x256xf32> to vector<1x256xf32>
    %76 = vector.broadcast %75 : vector<1x256xf32> to vector<2x256xf32>
    %77 = arith.mulf %74, %76 : vector<2x256xf32>
    %78 = vector.extract_strided_slice %1 {offsets = [0, 8], sizes = [2, 1], strides = [1, 1]} : vector<2x9xf32> to vector<2x1xf32>
    %79 = vector.broadcast %78 : vector<2x1xf32> to vector<2x256xf32>
    %80 = arith.mulf %77, %79 : vector<2x256xf32>
    %81 = arith.addf %65, %80 : vector<2x256xf32>
    %82 = arith.addf %73, %81 : vector<2x256xf32>
    %cst_15 = arith.constant dense<0.000000e+00> : vector<2x256xf32>
    %83 = tpu.matmul %5, %82, %cst_15 {dimension_numbers = #tpu.dot_dimension_numbers<[1], [0], [0], [1], [0, 0, 1, 1], [], []>} : vector<2x2xf32>, vector<2x256xf32>, vector<2x256xf32> -> vector<2x256xf32>
    %84 = vector.broadcast %3 : vector<2x1xf32> to vector<2x256xf32>
    %85 = arith.addf %83, %84 : vector<2x256xf32>
    %cst_16 = arith.constant 0.000000e+00 : f32
    %86 = vector.broadcast %cst_16 : f32 to vector<2x256xf32>
    %87 = arith.maximumf %85, %86 : vector<2x256xf32>
    %c0_17 = arith.constant 0 : index
    %c0_18 = arith.constant 0 : index
    %c0_19 = arith.constant 0 : index
    %88 = vector.load %arg6[%c0_17, %c0_18, %c0_19] : memref<1x2x512xf32, #tpu.memory_space<vmem>>, vector<1x2x256xf32>
    %89 = vector.shape_cast %88 : vector<1x2x256xf32> to vector<2x256xf32>
    %90 = vector.shape_cast %8 : vector<2x256xf32> to vector<1x2x256xf32>
    tpu.vector_store %arg6[%c0_17, %c0_18, %c0_19], %90 {strides = array<i32>} : memref<1x2x512xf32, #tpu.memory_space<vmem>>, vector<1x2x256xf32>,
    %c0_20 = arith.constant 0 : index
    %c0_21 = arith.constant 0 : index
    %c256 = arith.constant 256 : index
    %91 = vector.load %arg6[%c0_20, %c0_21, %c256] : memref<1x2x512xf32, #tpu.memory_space<vmem>>, vector<1x2x256xf32>
    %92 = vector.shape_cast %91 : vector<1x2x256xf32> to vector<2x256xf32>
    %93 = vector.shape_cast %87 : vector<2x256xf32> to vector<1x2x256xf32>
    tpu.vector_store %arg6[%c0_20, %c0_21, %c256], %93 {strides = array<i32>} : memref<1x2x512xf32, #tpu.memory_space<vmem>>, vector<1x2x256xf32>,
    return
  }
  func.func @transform_0(%arg0: i32) -> (i32, i32, i32, i32) {
    %c0_i32 = arith.constant 0 : i32
    %c0_i32_0 = arith.constant 0 : i32
    %c0_i32_1 = arith.constant 0 : i32
    %c0_i32_2 = arith.constant 0 : i32
    return %arg0, %c0_i32, %c0_i32_0, %c0_i32_1 : i32, i32, i32, i32
  }
  func.func @transform_1(%arg0: i32) -> (i32, i32) {
    %c0_i32 = arith.constant 0 : i32
    %c0_i32_0 = arith.constant 0 : i32
    %c0_i32_1 = arith.constant 0 : i32
    return %c0_i32, %c0_i32_0 : i32, i32
  }
  func.func @transform_2(%arg0: i32) -> (i32, i32) {
    %c0_i32 = arith.constant 0 : i32
    %c0_i32_0 = arith.constant 0 : i32
    %c0_i32_1 = arith.constant 0 : i32
    return %c0_i32, %c0_i32_0 : i32, i32
  }
  func.func @transform_3(%arg0: i32) -> (i32, i32) {
    %c0_i32 = arith.constant 0 : i32
    %c0_i32_0 = arith.constant 0 : i32
    %c0_i32_1 = arith.constant 0 : i32
    return %c0_i32, %c0_i32_0 : i32, i32
  }
  func.func @transform_4(%arg0: i32) -> (i32, i32) {
    %c0_i32 = arith.constant 0 : i32
    %c0_i32_0 = arith.constant 0 : i32
    %c0_i32_1 = arith.constant 0 : i32
    return %c0_i32, %c0_i32_0 : i32, i32
  }
  func.func @transform_5(%arg0: i32) -> (i32, i32, i32) {
    %c0_i32 = arith.constant 0 : i32
    %c0_i32_0 = arith.constant 0 : i32
    %c0_i32_1 = arith.constant 0 : i32
    return %arg0, %c0_i32, %c0_i32_0 : i32, i32, i32
  }
}

</mosaic_0001>

<llo_original>
// kernel: tpu_custom_call.1
$region0: #{tpu_custom_call.1}
  #allocation0 [shape = 'u32[]', space=smem, size = 0x4, offset = 0x4, fixed_abs, tag = 'smem constant byte address 0x4 - core index']
  #allocation1 [shape = 'u32[144,128]{1,0:T(1,128)}', space=vmem, size = 0x12000, scoped, tag = 'internal scratch']
  %s0 = inlined_call_operand.hbm [shape: f32[2,2,2,256], index: 0, kind: input, shape index: {}]
  %s1 = inlined_call_operand.hbm [shape: f32[2,2], index: 1, kind: input, shape index: {}]
  %s2 = inlined_call_operand.vmem [shape: f32[2,2], index: 2, kind: input, shape index: {}]
  %s3 = inlined_call_operand.vmem [shape: f32[2,16], index: 3, kind: input, shape index: {}]
  %s4 = inlined_call_operand.hbm [shape: f32[8,256], index: 4, kind: input, shape index: {}]
  %s5 = inlined_call_operand.hbm [shape: f32[2,2,512], index: 5, kind: output, shape index: {}]
  %s6 = sld [smem:[#allocation0]]
  $region65: #{tpu_custom_call.1} parent=0
    _
  %s8 = ssub.s32 1, %s6
  %s9 = scalar_select 0, %s8, %s6
  $region1: #{tpu_custom_call.1} parent=0
    #allocation2 [shape = 'u8[8192]{0}', space=vmem, size = 0x2000, scoped, tag = 'input window, operand 0']
    #allocation3 [shape = 's32[2]{0}', space=sflag, size = 0x8, scoped, tag = 'scoped memory for tpu_custom_call.1']
    #allocation4 [shape = 's32[2]{0}', space=sflag, size = 0x8, scoped, tag = 'scoped memory for tpu_custom_call.1']
    #allocation5 [shape = 'u8[1024]{0}', space=vmem, size = 0x400, scoped, tag = 'input window, operand 1, single buffered']
    #allocation6 [shape = 's32[1]{0}', space=sflag, size = 0x4, scoped, tag = 'scoped memory for tpu_custom_call.1']
    #allocation7 [shape = 'u8[8192]{0}', space=vmem, size = 0x2000, scoped, tag = 'input window, operand 4, single buffered']
    #allocation8 [shape = 'u8[8192]{0}', space=vmem, size = 0x2000, scoped, tag = 'output window, operand 0']
    %10 = vsyncpa [#allocation3], 0
    %s11 = scalar_lea.sflag [#allocation3], 1
    %12 = vsyncpa %s11, 0
    %13 = vsyncpa [#allocation6], 0
    %14 = vsyncpa [#allocation4], 0
    %s15 = scalar_lea.sflag [#allocation4], 1
    %16 = vsyncpa %s15, 0
    loop: start=0, step=1, limit=4
    $region2: #{tpu_custom_call.1} parent=1 // loop_pre_header
      _
    $region3: #{tpu_custom_call.1} parent=1 // loop_header
      %s18 = sphi 0, %s22
      %p19 = scmp.ge.s32.totalorder %s18, 4
      %s28 = sphi 0, %s30
      %s31 = sphi 0, %s28
      %s32 = sphi 0, %s31
      %s48 = sphi 0, %s32
      %s52 = sphi 0, %s52
      %s54 = sphi 0, %s52
      %s55 = sphi 0, %s54
      %s69 = sphi 0, %s55
      %s73 = sphi 0, %s73
      %s75 = sphi 0, %s73
      %s76 = sphi 0, %s75
      %s90 = sphi 0, %s76
      %s94 = sphi 0, %s94
      %s96 = sphi 0, %s94
      %s97 = sphi 0, %s96
      %s111 = sphi 0, %s97
      %s115 = sphi 0, %s115
      %s117 = sphi 0, %s115
      %s118 = sphi 0, %s117
      %s132 = sphi 0, %s118
      %s138 = sphi 0, %s140
      %s141 = sphi 0, %s138
      %s142 = sphi 0, %s141
      %s158 = sphi 0, %s142
    $region4: #{tpu_custom_call.1} parent=1 // loop_header_branch
      %21 = sbr.rel (%p19) target = $region8
    $region5: #{tpu_custom_call.1} parent=1 // loop_body
      %s23 = ssub.s32 %s18, 1
      %s24 = ssub.s32 %s18, 2
      %s25 = sadd.s32 %s18, 1
      %s26 = ssub.s32 %s18, %s25
      %p27 = scmp.eq.s32.totalorder %s26, 0
      %s29 = sadd.s32 %s28, 1
      %s30 = scalar_select %p27, %s28, %s29
      %p33 = pneg %p27
      %p34 = scmp.eq.s32.totalorder %s18, 1
      %p35 = por %p33, %p34
      %p36 = scmp.ne.s32.totalorder %s28, %s31
      %p37 = scmp.eq.s32.totalorder %s18, 0
      %p38 = por %p36, %p37
      %p39 = scmp.ne.s32.totalorder %s28, %s31
      %p40 = scmp.eq.s32.totalorder %s23, 1
      %p41 = por %p39, %p40
      %p42 = scmp.ne.s32.totalorder %s31, %s32
      %p43 = scmp.eq.s32.totalorder %s23, 0
      %p44 = por %p42, %p43
      %p45 = scmp.ne.s32.totalorder %s31, %s32
      %p46 = scmp.eq.s32.totalorder %s24, 1
      %p47 = por %p45, %p46
      %p49 = scmp.ne.s32.totalorder %s32, %s48
      %p50 = scmp.eq.s32.totalorder %s24, 0
      %p51 = por %p49, %p50
      %s53 = sadd.s32 %s52, 1
      %p56 = scmp.eq.s32.totalorder %s18, 1
      %p57 = scmp.ne.s32.totalorder %s52, %s54
      %p58 = scmp.eq.s32.totalorder %s18, 0
      %p59 = por %p57, %p58
      %p60 = scmp.ne.s32.totalorder %s52, %s54
      %p61 = scmp.eq.s32.totalorder %s23, 1
      %p62 = por %p60, %p61
      %p63 = scmp.ne.s32.totalorder %s54, %s55
      %p64 = scmp.eq.s32.totalorder %s23, 0
      %p65 = por %p63, %p64
      %p66 = scmp.ne.s32.totalorder %s54, %s55
      %p67 = scmp.eq.s32.totalorder %s24, 1
      %p68 = por %p66, %p67
      %p70 = scmp.ne.s32.totalorder %s55, %s69
      %p71 = scmp.eq.s32.totalorder %s24, 0
      %p72 = por %p70, %p71
      %s74 = sadd.s32 %s73, 1
      %p77 = scmp.eq.s32.totalorder %s18, 1
      %p78 = scmp.ne.s32.totalorder %s73, %s75
      %p79 = scmp.eq.s32.totalorder %s18, 0
      %p80 = por %p78, %p79
      %p81 = scmp.ne.s32.totalorder %s73, %s75
      %p82 = scmp.eq.s32.totalorder %s23, 1
      %p83 = por %p81, %p82
      %p84 = scmp.ne.s32.totalorder %s75, %s76
      %p85 = scmp.eq.s32.totalorder %s23, 0
      %p86 = por %p84, %p85
      %p87 = scmp.ne.s32.totalorder %s75, %s76
      %p88 = scmp.eq.s32.totalorder %s24, 1
      %p89 = por %p87, %p88
      %p91 = scmp.ne.s32.totalorder %s76, %s90
      %p92 = scmp.eq.s32.totalorder %s24, 0
      %p93 = por %p91, %p92
      %s95 = sadd.s32 %s94, 1
      %p98 = scmp.eq.s32.totalorder %s18, 1
      %p99 = scmp.ne.s32.totalorder %s94, %s96
      %p100 = scmp.eq.s32.totalorder %s18, 0
      %p101 = por %p99, %p100
      %p102 = scmp.ne.s32.totalorder %s94, %s96
      %p103 = scmp.eq.s32.totalorder %s23, 1
      %p104 = por %p102, %p103
      %p105 = scmp.ne.s32.totalorder %s96, %s97
      %p106 = scmp.eq.s32.totalorder %s23, 0
      %p107 = por %p105, %p106
      %p108 = scmp.ne.s32.totalorder %s96, %s97
      %p109 = scmp.eq.s32.totalorder %s24, 1
      %p110 = por %p108, %p109
      %p112 = scmp.ne.s32.totalorder %s97, %s111
      %p113 = scmp.eq.s32.totalorder %s24, 0
      %p114 = por %p112, %p113
      %s116 = sadd.s32 %s115, 1
      %p119 = scmp.eq.s32.totalorder %s18, 1
      %p120 = scmp.ne.s32.totalorder %s115, %s117
      %p121 = scmp.eq.s32.totalorder %s18, 0
      %p122 = por %p120, %p121
      %p123 = scmp.ne.s32.totalorder %s115, %s117
      %p124 = scmp.eq.s32.totalorder %s23, 1
      %p125 = por %p123, %p124
      %p126 = scmp.ne.s32.totalorder %s117, %s118
      %p127 = scmp.eq.s32.totalorder %s23, 0
      %p128 = por %p126, %p127
      %p129 = scmp.ne.s32.totalorder %s117, %s118
      %p130 = scmp.eq.s32.totalorder %s24, 1
      %p131 = por %p129, %p130
      %p133 = scmp.ne.s32.totalorder %s118, %s132
      %p134 = scmp.eq.s32.totalorder %s24, 0
      %p135 = por %p133, %p134
      %s136 = ssub.s32 %s18, %s25
      %p137 = scmp.eq.s32.totalorder %s136, 0
      %s139 = sadd.s32 %s138, 1
      %s140 = scalar_select %p137, %s138, %s139
      %p143 = pneg %p137
      %p144 = scmp.eq.s32.totalorder %s18, 1
      %p145 = por %p143, %p144
      %p146 = scmp.ne.s32.totalorder %s138, %s141
      %p147 = scmp.eq.s32.totalorder %s18, 0
      %p148 = por %p146, %p147
      %p149 = scmp.ne.s32.totalorder %s138, %s141
      %p150 = scmp.eq.s32.totalorder %s23, 1
      %p151 = por %p149, %p150
      %p152 = scmp.ne.s32.totalorder %s141, %s142
      %p153 = scmp.eq.s32.totalorder %s23, 0
      %p154 = por %p152, %p153
      %p155 = scmp.ne.s32.totalorder %s141, %s142
      %p156 = scmp.eq.s32.totalorder %s24, 1
      %p157 = por %p155, %p156
      %p159 = scmp.ne.s32.totalorder %s142, %s158
      %p160 = scmp.eq.s32.totalorder %s24, 0
      %p161 = por %p159, %p160
      %p162 = scmp.le.s32.totalorder 1, %s18
      %p163 = scmp.lt.s32.totalorder %s18, 3
      %p164 = pnand %p162, %p163
      %p165 = pneg %p164
      // Predicated region
      $region9: #{tpu_custom_call.1} parent=5 // pred_check
        _
      $region10: #{tpu_custom_call.1} parent=5 // pred_check_branch
        %167 = sbr.rel (%p164) target = $region12
      $region11: #{tpu_custom_call.1} parent=5 // pred_region
        %s168 = ssub.s32 %s18, 1
        // Predicated region
        $region13: #{tpu_custom_call.1} parent=11 // pred_check
          %p169 = pneg %p65
        $region14: #{tpu_custom_call.1} parent=11 // pred_check_branch
          %171 = sbr.rel (%p169) target = $region16
        $region15: #{tpu_custom_call.1} parent=11 // pred_region
          %s173 = ssub.s32 32, 32
          %174 = vsyncadd [#allocation6], %s173
          %s176 = sshll.u32 [#allocation5], 4
          %s177 = int_to_ptr.vmem [resolvable:$true] %s176
          %179 = dma.hbm_to_vmem [thread:$0]  %s1, 32, %s177, [#allocation6]
        $region16: #{tpu_custom_call.1} parent=11 // pred_fallthru
          _
        // Predicated region
        $region17: #{tpu_custom_call.1} parent=11 // pred_check
          %p180 = pneg %p86
        $region18: #{tpu_custom_call.1} parent=11 // pred_check_branch
          %182 = sbr.rel (%p180) target = $region20
        $region19: #{tpu_custom_call.1} parent=11 // pred_region
          _
        $region20: #{tpu_custom_call.1} parent=11 // pred_fallthru
          _
        // Predicated region
        $region21: #{tpu_custom_call.1} parent=11 // pred_check
          %p183 = pneg %p107
        $region22: #{tpu_custom_call.1} parent=11 // pred_check_branch
          %185 = sbr.rel (%p183) target = $region24
        $region23: #{tpu_custom_call.1} parent=11 // pred_region
          _
        $region24: #{tpu_custom_call.1} parent=11 // pred_fallthru
          _
        // Predicated region
        $region25: #{tpu_custom_call.1} parent=11 // pred_check
          %p186 = pneg %p128
        $region26: #{tpu_custom_call.1} parent=11 // pred_check_branch
          %188 = sbr.rel (%p186) target = $region28
        $region27: #{tpu_custom_call.1} parent=11 // pred_region
          %s190 = ssub.s32 256, 256
          %191 = vsyncadd [#allocation6], %s190
          %s193 = sshll.u32 [#allocation7], 4
          %s194 = int_to_ptr.vmem [resolvable:$true] %s193
          %196 = dma.hbm_to_vmem [thread:$0]  %s4, 256, %s194, [#allocation6]
        $region28: #{tpu_custom_call.1} parent=11 // pred_fallthru
          _
      $region12: #{tpu_custom_call.1} parent=5 // pred_fallthru
        _
      %p197 = scmp.lt.s32.totalorder %s18, 2
      // Predicated region
      $region29: #{tpu_custom_call.1} parent=5 // pred_check
        %p198 = pneg %p197
      $region30: #{tpu_custom_call.1} parent=5 // pred_check_branch
        %200 = sbr.rel (%p198) target = $region32
      $region31: #{tpu_custom_call.1} parent=5 // pred_region
        // Predicated region
        $region33: #{tpu_custom_call.1} parent=31 // pred_check
          %p201 = pneg %p38
        $region34: #{tpu_custom_call.1} parent=31 // pred_check_branch
          %203 = sbr.rel (%p201) target = $region36
        $region35: #{tpu_custom_call.1} parent=31 // pred_region
          %s204 = sand.u32 %s28, 1
          %s205 = scalar_lea.sflag [#allocation3], %s204
          %s206 = sand.u32 %s28, 1
          %s207 = smul.addr %s206, 8
          %s208 = scalar_lea.vmem [#allocation2], %s207
          %s210 = ssub.s32 128, 128
          %211 = vsyncadd %s205, %s210
          %s212 = smul.addr %s18, 4
          %s213 = smul.addr %s212, 32
          %s214 = scalar_lea.hbm %s0, %s213
          %s215 = sshll.u32 %s208, 4
          %s216 = int_to_ptr.vmem [resolvable:$true] %s215
          %221 = dma.hbm_to_vmem [thread:$0]  %s214, 128, %s216, %s205, 64, 64, 4
        $region36: #{tpu_custom_call.1} parent=31 // pred_fallthru
          _
      $region32: #{tpu_custom_call.1} parent=5 // pred_fallthru
        _
      %p222 = scmp.le.s32.totalorder 1, %s18
      %p223 = scmp.lt.s32.totalorder %s18, 3
      %p224 = pnand %p222, %p223
      %p225 = pneg %p224
      // Predicated region
      $region37: #{tpu_custom_call.1} parent=5 // pred_check
        _
      $region38: #{tpu_custom_call.1} parent=5 // pred_check_branch
        %227 = sbr.rel (%p224) target = $region40
      $region39: #{tpu_custom_call.1} parent=5 // pred_region
        %s228 = ssub.s32 %s18, 1
        %s229 = sand.u32 %s31, 1
        %s230 = scalar_lea.sflag [#allocation3], %s229
        %s231 = sand.u32 %s31, 1
        %s232 = smul.addr %s231, 8
        %s233 = scalar_lea.vmem [#allocation2], %s232
        // Predicated region
        $region41: #{tpu_custom_call.1} parent=39 // pred_check
          %p234 = pneg %p44
        $region42: #{tpu_custom_call.1} parent=39 // pred_check_branch
          %236 = sbr.rel (%p234) target = $region44
        $region43: #{tpu_custom_call.1} parent=39 // pred_region
          %237 = dma.done %s230, 128
        $region44: #{tpu_custom_call.1} parent=39 // pred_fallthru
          _
        // Predicated region
        $region45: #{tpu_custom_call.1} parent=39 // pred_check
          %p238 = pneg %p65
        $region46: #{tpu_custom_call.1} parent=39 // pred_check_branch
          %240 = sbr.rel (%p238) target = $region48
        $region47: #{tpu_custom_call.1} parent=39 // pred_region
          %241 = dma.done [#allocation6], 32
        $region48: #{tpu_custom_call.1} parent=39 // pred_fallthru
          _
        // Predicated region
        $region49: #{tpu_custom_call.1} parent=39 // pred_check
          %p242 = pneg %p128
        $region50: #{tpu_custom_call.1} parent=39 // pred_check_branch
          %244 = sbr.rel (%p242) target = $region52
        $region51: #{tpu_custom_call.1} parent=39 // pred_region
          %245 = dma.done [#allocation6], 256
        $region52: #{tpu_custom_call.1} parent=39 // pred_fallthru
          _
        %s246 = sand.u32 %s31, 1
        %s247 = scalar_lea.sflag [#allocation3], %s246
        %s248 = sand.u32 %s31, 1
        %s249 = smul.addr %s248, 8
        %s250 = scalar_lea.vmem [#allocation2], %s249
        %p251 = pneg %p44
        %p252 = pneg %p41
        %p253 = pneg %p65
        %p254 = pneg %p62
        %p255 = pneg %p86
        %p256 = pneg %p83
        %p257 = pneg %p107
        %p258 = pneg %p104
        %p259 = pneg %p128
        %p260 = pneg %p125
        %p261 = pneg %p154
        %p262 = pneg %p151
        %s263 = sand.u32 %s141, 1
        %s264 = scalar_lea.sflag [#allocation4], %s263
        %s265 = sand.u32 %s141, 1
        %s266 = smul.addr %s265, 8
        %s267 = scalar_lea.vmem [#allocation8], %s266
        %v268 = vld [vmem:[%s3] sm:$0x3]
        %v269 = vld [vmem:[#allocation5] sm:$0x3]
        %v270 = vld [vmem:[%s2] sm:$0x3]
        %v271 = vld [vmem:[#allocation7] sm:$0xff]
        %v272 = vld [vmem:[#allocation7 + $0x8] sm:$0xff]
        %v273 = vld [vmem:[%s233] sm:$0xf]
        %s274 = scalar_lea.vmem %s233, 4 [#allocation2]
        %v275 = vld [vmem:[%s274] sm:$0xf]
        %277 = vset.pattern.permute.xlu0 9
        %278 = vperm.xlu0 %277, %v268
        %v279 = vpop.permute.xlu0 %278
        %v283 = vunpack.c.l.s4 1983009808
        %v284 = vunpack.c.0.s8 %v283
        %v285 = vlaneseq
        %v286 = vshrl.u32 %v285, 7
        %v287 = vsub.s32 %v284, %v286
        %v288 = vrot.slane %v275, %v287
        %v289 = vcombine.high %v288, %v288
        %vm290 = vcmask 15360
        %v292 = vsel %vm290, %v269, 0
        %vm294 = vcmask 1041408
        %v295 = vsel %vm294, %v288, 0
        %v297 = vsel %vm294, %v289, 0
        %299 = vmatprep.subr.mxu0 0.0
        %300 = vmatpush1.msra.mxu0 0.0
        %301 = vmatprep.subr.mxu0 0.0
        %302 = vmatpush1.msra.mxu0 0.0
        %303 = vmatprep.subr.mxu0 0.0
        %304 = vmatpush1.msra.mxu0 0.0
        %305 = vmatprep.subr.mxu0 0.0
        %306 = vmatpush1.msra.mxu0 0.0
        %307 = vmatprep.subr.mxu0 0.0
        %308 = vmatpush1.msra.mxu0 0.0
        %309 = vmatprep.subr.mxu0 0.0
        %310 = vmatpush1.msra.mxu0 0.0
        %311 = vmatprep.subr.mxu0 0.0
        %312 = vmatpush1.msra.mxu0 0.0
        %313 = vmatprep.subr.mxu0 0.0
        %314 = vmatpush1.msra.mxu0 0.0
        %315 = vmatprep.subr.mxu0 0.0
        %316 = vmatpush1.msra.mxu0 0.0
        %317 = vmatprep.subr.mxu0 0.0
        %318 = vmatpush1.msra.mxu0 0.0
        %319 = vmatprep.subr.mxu0 0.0
        %320 = vmatpush1.msra.mxu0 0.0
        %321 = vmatprep.subr.mxu0 0.0
        %322 = vmatpush1.msra.mxu0 0.0
        %323 = vmatprep.subr.mxu0 0.0
        %324 = vmatpush1.msra.mxu0 0.0
        %325 = vmatprep.subr.mxu0 0.0
        %326 = vmatpush1.msra.mxu0 0.0
        %327 = vmatprep.subr.mxu0 0.0
        %328 = vmatpush1.msra.mxu0 0.0
        %329 = vmatprep.subr.mxu0 %v297
        %330 = vmatpush1.msra.mxu0 %v295
        %331 = vmatprep.subr.mxu0 0.0
        %332 = vmatpush2.msra.mxu0 0.0
        %333 = vmatprep.subr.mxu0 0.0
        %334 = vmatpush2.msra.mxu0 0.0
        %335 = vmatprep.subr.mxu0 0.0
        %336 = vmatpush2.msra.mxu0 0.0
        %337 = vmatprep.subr.mxu0 0.0
        %338 = vmatpush2.msra.mxu0 0.0
        %339 = vmatprep.subr.mxu0 0.0
        %340 = vmatpush2.msra.mxu0 0.0
        %341 = vmatprep.subr.mxu0 0.0
        %342 = vmatpush2.msra.mxu0 0.0
        %343 = vmatprep.subr.mxu0 0.0
        %344 = vmatpush2.msra.mxu0 0.0
        %345 = vmatprep.subr.mxu0 0.0
        %346 = vmatpush2.msra.mxu0 0.0
        %347 = vmatprep.subr.mxu0 0.0
        %348 = vmatpush2.msra.mxu0 0.0
        %349 = vmatprep.subr.mxu0 0.0
        %350 = vmatpush2.msra.mxu0 0.0
        %351 = vmatprep.subr.mxu0 0.0
        %352 = vmatpush2.msra.mxu0 0.0
        %353 = vmatprep.subr.mxu0 0.0
        %354 = vmatpush2.msra.mxu0 0.0
        %355 = vmatprep.subr.mxu0 0.0
        %356 = vmatpush2.msra.mxu0 0.0
        %357 = vmatprep.subr.mxu0 0.0
        %358 = vmatpush2.msra.mxu0 0.0
        %359 = vmatprep.subr.mxu0 0.0
        %360 = vmatpush2.msra.mxu0 0.0
        %361 = vmatprep.subr.mxu0 0.0
        %362 = vmatpush2.msra.mxu0 0.0
        %363 = vmatprep.mubr.f32.mxu0 0.0
        %364 = vmatmul.mubr.f32.gmra.mxu0 %v292
        %v365 = vpop.f32.mrf.mxu0
        %v366 = vadd.f32 %v279, %v365
        %v367 = vpop.f32.mrf.mxu0
        %v368 = vadd.f32 %v279, %v367
        %369 = vdwg.mxu0
        %v370 = vmax.f32 %v366, 0.0
        %v371 = vmax.f32 %v368, 0.0
        %372 = vset.pattern.permute.xlu0 4
        %373 = vperm.xlu0 %372, %v268
        %v374 = vpop.permute.xlu0 %373
        %v376 = vmul.f32 %v370, %v374
        %v377 = vmul.f32 %v371, %v374
        %378 = vrot.lane.b32.xlu0 %v370, 17
        %v379 = vpop.permute.xlu0 %378
        %380 = vrot.lane.b32.xlu0 %v371, 17
        %v381 = vpop.permute.xlu0 %380
        %v382 = vlaneseq
        %v383 = vand.u32 %v382, 127
        %vm384 = vcmp.lt.s32.totalorder %v383, 17
        %v385 = vsel %vm384, %v379, %v381
        %v386 = vsel %vm384, %v381, %v379
        %v387 = vlaneseq
        %v388 = vshrl.u32 %v387, 7
        %v389 = vsub.s32 0, %v388
        %v390 = vrot.slane %v271, %v389
        %v391 = vlaneseq
        %v392 = vshrl.u32 %v391, 7
        %v393 = vsub.s32 0, %v392
        %v394 = vrot.slane %v272, %v393
        %v395 = vmul.f32 %v386, %v390
        %v396 = vmul.f32 %v385, %v394
        %397 = vset.pattern.permute.xlu0 0
        %398 = vperm.xlu0 %397, %v268
        %v399 = vpop.permute.xlu0 %398
        %v401 = vmul.f32 %v395, %v399
        %v402 = vmul.f32 %v396, %v399
        %v403 = vadd.f32 %v376, %v401
        %v404 = vadd.f32 %v377, %v402
        %405 = vrot.lane.b32.xlu0 %v370, 16
        %v406 = vpop.permute.xlu0 %405
        %407 = vrot.lane.b32.xlu0 %v371, 16
        %v408 = vpop.permute.xlu0 %407
        %vm409 = vcmp.lt.s32.totalorder %v383, 16
        %v410 = vsel %vm409, %v406, %v408
        %v411 = vsel %vm409, %v408, %v406
        %v412 = vlaneseq
        %v413 = vshrl.u32 %v412, 7
        %v414 = vsub.s32 1, %v413
        %v415 = vrot.slane %v271, %v414
        %v416 = vlaneseq
        %v417 = vshrl.u32 %v416, 7
        %v418 = vsub.s32 1, %v417
        %v419 = vrot.slane %v272, %v418
        %v420 = vmul.f32 %v411, %v415
        %v421 = vmul.f32 %v410, %v419
        %422 = vset.pattern.permute.xlu0 1
        %423 = vperm.xlu0 %422, %v268
        %v424 = vpop.permute.xlu0 %423
        %v426 = vmul.f32 %v420, %v424
        %v427 = vmul.f32 %v421, %v424
        %428 = vrot.lane.b32.xlu0 %v370, 15
        %v429 = vpop.permute.xlu0 %428
        %430 = vrot.lane.b32.xlu0 %v371, 15
        %v431 = vpop.permute.xlu0 %430
        %vm432 = vcmp.lt.s32.totalorder %v383, 15
        %v433 = vsel %vm432, %v429, %v431
        %v434 = vsel %vm432, %v431, %v429
        %v435 = vlaneseq
        %v436 = vshrl.u32 %v435, 7
        %v437 = vsub.s32 2, %v436
        %v438 = vrot.slane %v271, %v437
        %v439 = vlaneseq
        %v440 = vshrl.u32 %v439, 7
        %v441 = vsub.s32 2, %v440
        %v442 = vrot.slane %v272, %v441
        %v443 = vmul.f32 %v434, %v438
        %v444 = vmul.f32 %v433, %v442
        %445 = vset.pattern.permute.xlu0 2
        %446 = vperm.xlu0 %445, %v268
        %v447 = vpop.permute.xlu0 %446
        %v449 = vmul.f32 %v443, %v447
        %v450 = vmul.f32 %v444, %v447
        %v451 = vadd.f32 %v403, %v449
        %v452 = vadd.f32 %v404, %v450
        %453 = vrot.lane.b32.xlu0 %v370, 1
        %v454 = vpop.permute.xlu0 %453
        %455 = vrot.lane.b32.xlu0 %v371, 1
        %v456 = vpop.permute.xlu0 %455
        %vm457 = vcmp.lt.s32.totalorder %v383, 1
        %v458 = vsel %vm457, %v454, %v456
        %v459 = vsel %vm457, %v456, %v454
        %v460 = vlaneseq
        %v461 = vshrl.u32 %v460, 7
        %v462 = vsub.s32 3, %v461
        %v463 = vrot.slane %v271, %v462
        %v464 = vlaneseq
        %v465 = vshrl.u32 %v464, 7
        %v466 = vsub.s32 3, %v465
        %v467 = vrot.slane %v272, %v466
        %v468 = vmul.f32 %v459, %v463
        %v469 = vmul.f32 %v458, %v467
        %470 = vset.pattern.permute.xlu0 3
        %471 = vperm.xlu0 %470, %v268
        %v472 = vpop.permute.xlu0 %471
        %v474 = vmul.f32 %v468, %v472
        %v475 = vmul.f32 %v469, %v472
        %v476 = vadd.f32 %v426, %v474
        %v477 = vadd.f32 %v427, %v475
        %478 = vrot.lane.b32.xlu0 %v370, 127
        %v479 = vpop.permute.xlu0 %478
        %480 = vrot.lane.b32.xlu0 %v371, 127
        %v481 = vpop.permute.xlu0 %480
        %vm482 = vcmp.lt.s32.totalorder %v383, 127
        %v483 = vsel %vm482, %v479, %v481
        %v484 = vsel %vm482, %v481, %v479
        %v485 = vlaneseq
        %v486 = vshrl.u32 %v485, 7
        %v487 = vsub.s32 4, %v486
        %v488 = vrot.slane %v271, %v487
        %v489 = vlaneseq
        %v490 = vshrl.u32 %v489, 7
        %v491 = vsub.s32 4, %v490
        %v492 = vrot.slane %v272, %v491
        %v493 = vmul.f32 %v483, %v488
        %v494 = vmul.f32 %v484, %v492
        %495 = vset.pattern.permute.xlu0 5
        %496 = vperm.xlu0 %495, %v268
        %v497 = vpop.permute.xlu0 %496
        %v499 = vmul.f32 %v493, %v497
        %v500 = vmul.f32 %v494, %v497
        %v501 = vadd.f32 %v451, %v499
        %v502 = vadd.f32 %v452, %v500
        %503 = vrot.lane.b32.xlu0 %v370, 113
        %v504 = vpop.permute.xlu0 %503
        %505 = vrot.lane.b32.xlu0 %v371, 113
        %v506 = vpop.permute.xlu0 %505
        %vm507 = vcmp.lt.s32.totalorder %v383, 113
        %v508 = vsel %vm507, %v504, %v506
        %v509 = vsel %vm507, %v506, %v504
        %v510 = vlaneseq
        %v511 = vshrl.u32 %v510, 7
        %v512 = vsub.s32 5, %v511
        %v513 = vrot.slane %v271, %v512
        %v514 = vlaneseq
        %v515 = vshrl.u32 %v514, 7
        %v516 = vsub.s32 5, %v515
        %v517 = vrot.slane %v272, %v516
        %v518 = vmul.f32 %v508, %v513
        %v519 = vmul.f32 %v509, %v517
        %520 = vset.pattern.permute.xlu0 6
        %521 = vperm.xlu0 %520, %v268
        %v522 = vpop.permute.xlu0 %521
        %v524 = vmul.f32 %v518, %v522
        %v525 = vmul.f32 %v519, %v522
        %v526 = vadd.f32 %v476, %v524
        %v527 = vadd.f32 %v477, %v525
        %528 = vrot.lane.b32.xlu0 %v370, 112
        %v529 = vpop.permute.xlu0 %528
        %530 = vrot.lane.b32.xlu0 %v371, 112
        %v531 = vpop.permute.xlu0 %530
        %vm532 = vcmp.lt.s32.totalorder %v383, 112
        %v533 = vsel %vm532, %v529, %v531
        %v534 = vsel %vm532, %v531, %v529
        %v535 = vlaneseq
        %v536 = vshrl.u32 %v535, 7
        %v537 = vsub.s32 6, %v536
        %v538 = vrot.slane %v271, %v537
        %v539 = vlaneseq
        %v540 = vshrl.u32 %v539, 7
        %v541 = vsub.s32 6, %v540
        %v542 = vrot.slane %v272, %v541
        %v543 = vmul.f32 %v533, %v538
        %v544 = vmul.f32 %v534, %v542
        %545 = vset.pattern.permute.xlu0 7
        %546 = vperm.xlu0 %545, %v268
        %v547 = vpop.permute.xlu0 %546
        %v549 = vmul.f32 %v543, %v547
        %v550 = vmul.f32 %v544, %v547
        %v551 = vadd.f32 %v501, %v549
        %v552 = vadd.f32 %v502, %v550
        %553 = vrot.lane.b32.xlu0 %v370, 111
        %v554 = vpop.permute.xlu0 %553
        %555 = vrot.lane.b32.xlu0 %v371, 111
        %v556 = vpop.permute.xlu0 %555
        %vm557 = vcmp.lt.s32.totalorder %v383, 111
        %v558 = vsel %vm557, %v554, %v556
        %v559 = vsel %vm557, %v556, %v554
        %v560 = vlaneseq
        %v561 = vshrl.u32 %v560, 7
        %v562 = vsub.s32 7, %v561
        %v563 = vrot.slane %v271, %v562
        %v564 = vlaneseq
        %v565 = vshrl.u32 %v564, 7
        %v566 = vsub.s32 7, %v565
        %v567 = vrot.slane %v272, %v566
        %v568 = vmul.f32 %v558, %v563
        %v569 = vmul.f32 %v559, %v567
        %570 = vset.pattern.permute.xlu0 8
        %571 = vperm.xlu0 %570, %v268
        %v572 = vpop.permute.xlu0 %571
        %v574 = vmul.f32 %v568, %v572
        %v575 = vmul.f32 %v569, %v572
        %v576 = vadd.f32 %v526, %v574
        %v577 = vadd.f32 %v527, %v575
        %v578 = vadd.f32 %v551, %v576
        %v579 = vadd.f32 %v552, %v577
        %580 = vset.pattern.permute.xlu0 10
        %581 = vperm.xlu0 %580, %v268
        %v582 = vpop.permute.xlu0 %581
        %v585 = vsel %vm290, %v270, 0
        %v588 = vsel %vm294, %v578, 0
        %v591 = vsel %vm294, %v579, 0
        %593 = vmatprep.subr.mxu0 0.0
        %594 = vmatpush1.msra.mxu0 0.0
        %595 = vmatprep.subr.mxu0 0.0
        %596 = vmatpush1.msra.mxu0 0.0
        %597 = vmatprep.subr.mxu0 0.0
        %598 = vmatpush1.msra.mxu0 0.0
        %599 = vmatprep.subr.mxu0 0.0
        %600 = vmatpush1.msra.mxu0 0.0
        %601 = vmatprep.subr.mxu0 0.0
        %602 = vmatpush1.msra.mxu0 0.0
        %603 = vmatprep.subr.mxu0 0.0
        %604 = vmatpush1.msra.mxu0 0.0
        %605 = vmatprep.subr.mxu0 0.0
        %606 = vmatpush1.msra.mxu0 0.0
        %607 = vmatprep.subr.mxu0 0.0
        %608 = vmatpush1.msra.mxu0 0.0
        %609 = vmatprep.subr.mxu0 0.0
        %610 = vmatpush1.msra.mxu0 0.0
        %611 = vmatprep.subr.mxu0 0.0
        %612 = vmatpush1.msra.mxu0 0.0
        %613 = vmatprep.subr.mxu0 0.0
        %614 = vmatpush1.msra.mxu0 0.0
        %615 = vmatprep.subr.mxu0 0.0
        %616 = vmatpush1.msra.mxu0 0.0
        %617 = vmatprep.subr.mxu0 0.0
        %618 = vmatpush1.msra.mxu0 0.0
        %619 = vmatprep.subr.mxu0 0.0
        %620 = vmatpush1.msra.mxu0 0.0
        %621 = vmatprep.subr.mxu0 0.0
        %622 = vmatpush1.msra.mxu0 0.0
        %623 = vmatprep.subr.mxu0 %v591
        %624 = vmatpush1.msra.mxu0 %v588
        %625 = vmatprep.subr.mxu0 0.0
        %626 = vmatpush2.msra.mxu0 0.0
        %627 = vmatprep.subr.mxu0 0.0
        %628 = vmatpush2.msra.mxu0 0.0
        %629 = vmatprep.subr.mxu0 0.0
        %630 = vmatpush2.msra.mxu0 0.0
        %631 = vmatprep.subr.mxu0 0.0
        %632 = vmatpush2.msra.mxu0 0.0
        %633 = vmatprep.subr.mxu0 0.0
        %634 = vmatpush2.msra.mxu0 0.0
        %635 = vmatprep.subr.mxu0 0.0
        %636 = vmatpush2.msra.mxu0 0.0
        %637 = vmatprep.subr.mxu0 0.0
        %638 = vmatpush2.msra.mxu0 0.0
        %639 = vmatprep.subr.mxu0 0.0
        %640 = vmatpush2.msra.mxu0 0.0
        %641 = vmatprep.subr.mxu0 0.0
        %642 = vmatpush2.msra.mxu0 0.0
        %643 = vmatprep.subr.mxu0 0.0
        %644 = vmatpush2.msra.mxu0 0.0
        %645 = vmatprep.subr.mxu0 0.0
        %646 = vmatpush2.msra.mxu0 0.0
        %647 = vmatprep.subr.mxu0 0.0
        %648 = vmatpush2.msra.mxu0 0.0
        %649 = vmatprep.subr.mxu0 0.0
        %650 = vmatpush2.msra.mxu0 0.0
        %651 = vmatprep.subr.mxu0 0.0
        %652 = vmatpush2.msra.mxu0 0.0
        %653 = vmatprep.subr.mxu0 0.0
        %654 = vmatpush2.msra.mxu0 0.0
        %655 = vmatprep.subr.mxu0 0.0
        %656 = vmatpush2.msra.mxu0 0.0
        %657 = vmatprep.mubr.f32.mxu0 0.0
        %658 = vmatmul.mubr.f32.gmra.mxu0 %v585
        %v659 = vpop.f32.mrf.mxu0
        %v660 = vadd.f32 %v582, %v659
        %v661 = vpop.f32.mrf.mxu0
        %v662 = vadd.f32 %v582, %v661
        %663 = vdwg.mxu0
        %v664 = vmax.f32 %v660, 0.0
        %v665 = vmax.f32 %v662, 0.0
        %666 = vst [vmem:[%s267] sm:$0xf] %v273
        %v669 = vcombine.low %v664, %v665
        %v671 = vunpack.c.l.s4 1983009808
        %v672 = vunpack.c.0.s8 %v671
        %v673 = vlaneseq
        %v674 = vshrl.u32 %v673, 7
        %v675 = vsub.s32 %v672, %v674
        %v676 = vrot.slane %v669, %v675
        %678 = vst [vmem:[%s267 + $0x4] sm:$0xf] %v676
        %s679 = sand.u32 %s141, 1
        %s680 = scalar_lea.sflag [#allocation4], %s679
        %s681 = sand.u32 %s141, 1
        %s682 = smul.addr %s681, 8
        %s683 = scalar_lea.vmem [#allocation8], %s682
        // Predicated region
        $region53: #{tpu_custom_call.1} parent=39 // pred_check
          %p684 = pneg %p151
        $region54: #{tpu_custom_call.1} parent=39 // pred_check_branch
          %686 = sbr.rel (%p684) target = $region56
        $region55: #{tpu_custom_call.1} parent=39 // pred_region
          %s688 = ssub.s32 128, 128
          %689 = vsyncadd %s680, %s688
          %s690 = smul.addr %s23, 4
          %s691 = smul.addr %s690, 32
          %s692 = scalar_lea.hbm %s5, %s691
          %s694 = sshll.u32 %s683, 4
          %s695 = int_to_ptr.vmem [resolvable:$true] %s694
          %697 = dma.vmem_to_hbm [thread:$0]  %s695, 128, %s692, %s680
        $region56: #{tpu_custom_call.1} parent=39 // pred_fallthru
          _
      $region40: #{tpu_custom_call.1} parent=5 // pred_fallthru
        _
      %p698 = scmp.le.s32.totalorder 2, %s18
      // Predicated region
      $region57: #{tpu_custom_call.1} parent=5 // pred_check
        %p699 = pneg %p698
      $region58: #{tpu_custom_call.1} parent=5 // pred_check_branch
        %701 = sbr.rel (%p699) target = $region60
      $region59: #{tpu_custom_call.1} parent=5 // pred_region
        %s702 = ssub.s32 %s18, 2
        // Predicated region
        $region61: #{tpu_custom_call.1} parent=59 // pred_check
          %p703 = pneg %p157
        $region62: #{tpu_custom_call.1} parent=59 // pred_check_branch
          %705 = sbr.rel (%p703) target = $region64
        $region63: #{tpu_custom_call.1} parent=59 // pred_region
          %s706 = sand.u32 %s142, 1
          %s707 = scalar_lea.sflag [#allocation4], %s706
          %s708 = sand.u32 %s142, 1
          %s709 = smul.addr %s708, 8
          %s710 = scalar_lea.vmem [#allocation8], %s709
          %711 = dma.done %s707, 128
        $region64: #{tpu_custom_call.1} parent=59 // pred_fallthru
          _
      $region60: #{tpu_custom_call.1} parent=5 // pred_fallthru
        _
    $region6: #{tpu_custom_call.1} parent=1 // loop_footer
      %s22 = sadd.s32 1, %s18
    $region7: #{tpu_custom_call.1} parent=1 // loop_footer_branch
      %17 = sbr.rel target = $region3
    $region8: #{tpu_custom_call.1} parent=1 // loop_exit
      _
    %712 = vsyncpa [#allocation3], 1
    %s713 = scalar_lea.sflag [#allocation3], 1
    %714 = vsyncpa %s713, 1
    %715 = vsyncpa [#allocation6], 1
    %716 = vsyncpa [#allocation4], 1
    %s717 = scalar_lea.sflag [#allocation4], 1
    %718 = vsyncpa %s717, 1

</llo_original>
